<compile_context>
chip_gen: v7x
topology: tpu7x:2x2x1
jax: 0.10.0
libtpu: 0.0.40
codegen_flags: <defaults>
</compile_context>

<pallas_src>
import jax
import jax.numpy as jnp
from jax.experimental import pallas as pl
from jax.experimental.pallas import tpu as pltpu


def _cdiv(a, b):
    return -(-a // b)


def _round_up(x, m):
    return _cdiv(x, m) * m


def _chip_params():
    """(pipeline-buffer byte budget, vmem_limit_bytes, min input-block bytes)."""
    try:
        cap = int(pltpu.get_tpu_info().vmem_capacity_bytes)
    except Exception:
        cap = 64 * 1024 * 1024                        # conservative: v7x per-TC VMEM
    # 64 MiB scoped limit on v5e/v6e (128 MiB physical), 48 MiB on v7x (64 MiB).
    vmem_limit = min(cap * 3 // 4, 64 * 1024 * 1024)
    # Double-buffering is already accounted for in the per-row byte math below,
    # so use ~0.75x of the limit as the pipeline budget (not limit // 2 // 2).
    budget = vmem_limit * 3 // 4
    # v7x's 3.2 TB/s HBM needs bigger per-step blocks to hide the ~0.35us grid
    # overhead; 2 MiB blocks already reach ~85%+ of roofline on v5e/v6e.
    min_block = 8 * 1024 * 1024 if cap <= 64 * 1024 * 1024 else 2 * 1024 * 1024
    return budget, vmem_limit, min_block


def _select_tile_b(B, in_row_bytes, out_row_bytes, pack, budget, min_block_bytes):
    """Rows per block: byte-sized blocks, >=2 (preferably even) grid steps, no padding."""
    if B <= pack:
        return B                                      # single full-extent block
    pipe_row = 2 * (in_row_bytes + out_row_bytes)     # double-buffered in + out
    max_rows = max(pack, (budget // pipe_row) // pack * pack)
    min_rows = _round_up(_cdiv(min_block_bytes, in_row_bytes), pack)
    # >=2 grid steps: overlap writeback(i) with input DMA(i+1) and give the v7x
    # megacore two shards.  This cap outranks the block-byte floor.
    two_step_cap = _round_up(_cdiv(B, 2), pack)
    tile_b = max(pack, min(min_rows, max_rows, two_step_cap))
    # Prefer an even step count (balances the 2 TensorCores on v7x; free on
    # v5e/v6e which have a single TC).
    n = _cdiv(B, tile_b)
    if n > 1 and n % 2 == 1:
        for n_even in (n - 1, n + 1):                 # bigger blocks first
            if n_even < 2:
                continue
            cand = _round_up(_cdiv(B, n_even), pack)
            if pack <= cand <= max_rows and _cdiv(B, cand) % 2 == 0:
                tile_b = cand
                break
    return tile_b


def _make_flat_kernel(arity, F):
    def kernel(x_ref, o_ref):
        # x_ref: (tile_b, arity*F) lane-dense; unrolled VPU maximum over groups.
        # Slices are 128-aligned (F % 128 == 0 guaranteed by the wrapper).
        m = x_ref[:, 0:F]
        for k in range(1, arity):
            m = jnp.maximum(m, x_ref[:, k * F:(k + 1) * F])
        o_ref[...] = jnp.maximum(m, 0).astype(o_ref.dtype)   # clamp(min=0)
    return kernel


def _maxout_groups_kernel(*refs):
    # refs = (group_0, ..., group_{arity-1}, out); each block is (tile_b, tile_f).
    *x_refs, o_ref = refs
    m = x_refs[0][...]
    for r in x_refs[1:]:
        m = jnp.maximum(m, r[...])
    o_ref[...] = jnp.maximum(m, 0).astype(o_ref.dtype)


def _group_spec(tile_b, tile_f, k):
    def index_map(i, j):
        return (i, k, j)                              # group stride F lives here
    return pl.BlockSpec((tile_b, pl.Squeezed(), tile_f), index_map)


def clamped_maxout(x, arity, *, tile_b=None, tile_f=None):
    """x: [B, arity*F] -> [B, F]; relu(max over the arity maxout groups)."""
    B, C = x.shape
    assert C % arity == 0, "channel dim must be divisible by arity"
    F = C // arity
    itemsize = jnp.dtype(x.dtype).itemsize
    pack = max(8, 32 // itemsize)                     # 8 rows f32, 16 bf16, 32 int8
    budget, vmem_limit, min_block = _chip_params()

    cost = pl.CostEstimate(flops=B * C, transcendentals=0,
                           bytes_accessed=(B * C + B * F) * itemsize)

    def _params(sem):
        # Note: on v7x pltpu.CORE_PARALLEL is worth sweeping for the batch axis.
        return pltpu.CompilerParams(dimension_semantics=sem,
                                    vmem_limit_bytes=vmem_limit)

    # Flat path: one contiguous (tile_b, C) DMA per step.  Requires lane-aligned
    # maxout slices (F % 128 == 0, or arity == 1) and the block to fit the VMEM
    # budget at >= `pack` rows; otherwise fall through to the grouped path.
    flat_ok = (tile_f is None
               and (arity == 1 or F % 128 == 0)
               and 2 * (C + F) * itemsize * pack <= budget)

    if flat_ok:
        if tile_b is None:
            tb = _select_tile_b(B, C * itemsize, F * itemsize, pack, budget, min_block)
        else:
            tb = tile_b
            assert tb == B or tb % pack == 0
        return pl.pallas_call(
            _make_flat_kernel(arity, F),
            out_shape=jax.ShapeDtypeStruct((B, F), x.dtype),
            grid_spec=pltpu.PrefetchScalarGridSpec(
                num_scalar_prefetch=0,
                grid=(pl.cdiv(B, tb),),
                in_specs=[pl.BlockSpec((tb, C), lambda i: (i, 0))],
                out_specs=pl.BlockSpec((tb, F), lambda i: (i, 0))),
            compiler_params=_params(("parallel",)),
            cost_estimate=cost,
        )(x)

    # Grouped path: [B, arity, F] view, one lane-dense (tile_b, tile_f) block
    # per maxout group.  Used for non-128-aligned F or very wide layers.
    if tile_f is None:
        if F % 128 != 0:
            tile_f = F                                # full-extent lane block
        else:
            tile_f = min(F, 512)                      # >=2 KiB contiguous DMA runs
            while tile_f > 128 and 2 * (arity + 1) * tile_f * itemsize * pack > budget:
                tile_f -= 128
    assert tile_f == F or tile_f % 128 == 0

    if tile_b is None:
        tb = _select_tile_b(B, arity * tile_f * itemsize, tile_f * itemsize,
                            pack, budget, min_block)
    else:
        tb = tile_b
        assert tb == B or tb % pack == 0

    x3 = x.reshape(B, arity, F)
    return pl.pallas_call(
        _maxout_groups_kernel,
        out_shape=jax.ShapeDtypeStruct((B, F), x.dtype),
        grid_spec=pltpu.PrefetchScalarGridSpec(
            num_scalar_prefetch=0,
            grid=(pl.cdiv(B, tb), pl.cdiv(F, tile_f)),
            in_specs=[_group_spec(tb, tile_f, k) for k in range(arity)],
            out_specs=pl.BlockSpec((tb, tile_f), lambda i, j: (i, j))),
        compiler_params=_params(("parallel", "parallel")),
        cost_estimate=cost,
    )(*([x3] * arity))


def clamped_maxout_ref(x, arity):
    B, C = x.shape
    F = C // arity
    return jnp.maximum(jnp.max(x.reshape(B, arity, F), axis=1), 0.0)


# TODO(synk): penalty() is a training-time regularizer (uses target_act/pen_act),
# not part of forward(); it is intentionally not implemented as a kernel.


if __name__ == "__main__":
    key = jax.random.PRNGKey(0)
    k1, k2, k3, k4 = jax.random.split(key, 4)

    # 1) Flat lane-dense path, single full-extent block (B == sublane pack).
    arity, B, F = 4, 8, 128
    x = jax.random.normal(k1, (B, arity * F), dtype=jnp.float32)
    out = jax.block_until_ready(clamped_maxout(x, arity))
    assert out.shape == (B, F)
    assert jnp.allclose(out, clamped_maxout_ref(x, arity), atol=1e-6)

    # 2) Flat path with a ragged last block (B=20 -> 2 steps, no host padding).
    arity2, B2, F2 = 3, 20, 256
    x2 = jax.random.normal(k2, (B2, arity2 * F2), dtype=jnp.float32)
    out2 = jax.block_until_ready(clamped_maxout(x2, arity2))
    assert out2.shape == (B2, F2)
    assert jnp.allclose(out2, clamped_maxout_ref(x2, arity2), atol=1e-6)

    # 3) Non-lane-aligned F (F=96) -> grouped path with full-extent lane block.
    arity3, B3, F3 = 2, 10, 96
    x3 = jax.random.normal(k3, (B3, arity3 * F3), dtype=jnp.float32)
    out3 = jax.block_until_ready(clamped_maxout(x3, arity3))
    assert out3.shape == (B3, F3)
    assert jnp.allclose(out3, clamped_maxout_ref(x3, arity3), atol=1e-6)

    # 4) Explicit feature tiling (grouped path, 2-D parallel grid).
    arity4, B4, F4 = 3, 16, 256
    x4 = jax.random.normal(k4, (B4, arity4 * F4), dtype=jnp.float32)
    out4 = jax.block_until_ready(clamped_maxout(x4, arity4, tile_f=128))
    assert out4.shape == (B4, F4)
    assert jnp.allclose(out4, clamped_maxout_ref(x4, arity4), atol=1e-6)

    print("KERNEL_OK")
</pallas_src>

<mosaic_0001>
module attributes {stable_mosaic.version = 11 : i64} {
  func.func @kernel(%arg0: i32, %arg1: memref<8x512xf32, #tpu.memory_space<vmem>>, %arg2: memref<8x128xf32, #tpu.memory_space<vmem>>) attributes {dimension_semantics = [#tpu.dimension_semantics<parallel>], iteration_bounds = array<i64: 1>, scalar_prefetch = 0 : i64, scratch_operands = 0 : i64, tpu.core_type = #tpu.core_type<tc>, window_params = [{transform_indices = @transform_0, window_bounds = array<i64: 8, 512>}, {transform_indices = @transform_1, window_bounds = array<i64: 8, 128>}]} {
    %c0 = arith.constant 0 : index
    %c0_0 = arith.constant 0 : index
    %0 = vector.load %arg1[%c0, %c0_0] : memref<8x512xf32, #tpu.memory_space<vmem>>, vector<8x128xf32>
    %c0_1 = arith.constant 0 : index
    %c128 = arith.constant 128 : index
    %1 = vector.load %arg1[%c0_1, %c128] : memref<8x512xf32, #tpu.memory_space<vmem>>, vector<8x128xf32>
    %2 = arith.maximumf %0, %1 : vector<8x128xf32>
    %c0_2 = arith.constant 0 : index
    %c256 = arith.constant 256 : index
    %3 = vector.load %arg1[%c0_2, %c256] : memref<8x512xf32, #tpu.memory_space<vmem>>, vector<8x128xf32>
    %4 = arith.maximumf %2, %3 : vector<8x128xf32>
    %c0_3 = arith.constant 0 : index
    %c384 = arith.constant 384 : index
    %5 = vector.load %arg1[%c0_3, %c384] : memref<8x512xf32, #tpu.memory_space<vmem>>, vector<8x128xf32>
    %6 = arith.maximumf %4, %5 : vector<8x128xf32>
    %cst = arith.constant 0.000000e+00 : f32
    %7 = vector.broadcast %cst : f32 to vector<8x128xf32>
    %8 = arith.maximumf %6, %7 : vector<8x128xf32>
    %c0_4 = arith.constant 0 : index
    %c0_5 = arith.constant 0 : index
    %9 = vector.load %arg2[%c0_4, %c0_5] : memref<8x128xf32, #tpu.memory_space<vmem>>, vector<8x128xf32>
    tpu.vector_store %arg2[%c0_4, %c0_5], %8 {strides = array<i32>} : memref<8x128xf32, #tpu.memory_space<vmem>>, vector<8x128xf32>,
    return
  }
  func.func @transform_0(%arg0: i32) -> (i32, i32) {
    %c0_i32 = arith.constant 0 : i32
    %c0_i32_0 = arith.constant 0 : i32
    return %arg0, %c0_i32 : i32, i32
  }
  func.func @transform_1(%arg0: i32) -> (i32, i32) {
    %c0_i32 = arith.constant 0 : i32
    %c0_i32_0 = arith.constant 0 : i32
    return %arg0, %c0_i32 : i32, i32
  }
}

</mosaic_0001>

<llo_original>
// kernel: tpu_custom_call.1
$region0: #{tpu_custom_call.1}
  #allocation0 [shape = 'u32[]', space=smem, size = 0x4, offset = 0x4, fixed_abs, tag = 'smem constant byte address 0x4 - core index']
  #allocation1 [shape = 'u32[144,128]{1,0:T(1,128)}', space=vmem, size = 0x12000, scoped, tag = 'internal scratch']
  %s0 = inlined_call_operand.hbm [shape: f32[8,512], index: 0, kind: input, shape index: {}]
  %s1 = inlined_call_operand.hbm [shape: f32[8,128], index: 1, kind: output, shape index: {}]
  %s2 = sld [smem:[#allocation0]]
  $region18: #{tpu_custom_call.1} parent=0
    _
  %s4 = ssub.s32 1, %s2
  %s5 = scalar_select 0, %s4, %s2
  $region1: #{tpu_custom_call.1} parent=0
    #allocation2 [shape = 'u8[16384]{0}', space=vmem, size = 0x4000, scoped, tag = 'input window, operand 0, single buffered']
    #allocation3 [shape = 's32[1]{0}', space=sflag, size = 0x4, scoped, tag = 'scoped memory for tpu_custom_call.1']
    #allocation4 [shape = 's32[1]{0}', space=sflag, size = 0x4, scoped, tag = 'scoped memory for tpu_custom_call.1']
    #allocation5 [shape = 'u8[4096]{0}', space=vmem, size = 0x1000, scoped, tag = 'output window, operand 0, single buffered']
    %6 = vsyncpa [#allocation3], 0
    %7 = vsyncpa [#allocation4], 0
    // Predicated region
    $region2: #{tpu_custom_call.1} parent=1 // pred_check
      _
    $region3: #{tpu_custom_call.1} parent=1 // pred_check_branch
      %9 = sbr.rel (0) target = $region5
    $region4: #{tpu_custom_call.1} parent=1 // pred_region
      %s11 = ssub.s32 512, 512
      %12 = vsyncadd [#allocation3], %s11
      %s14 = sshll.u32 [#allocation2], 4
      %s15 = int_to_ptr.vmem [resolvable:$true] %s14
      %17 = dma.hbm_to_vmem [thread:$0]  %s0, 512, %s15, [#allocation3]
    $region5: #{tpu_custom_call.1} parent=1 // pred_fallthru
      _
    // Predicated region
    $region6: #{tpu_custom_call.1} parent=1 // pred_check
      _
    $region7: #{tpu_custom_call.1} parent=1 // pred_check_branch
      %19 = sbr.rel (0) target = $region9
    $region8: #{tpu_custom_call.1} parent=1 // pred_region
      %20 = dma.done [#allocation3], 512
    $region9: #{tpu_custom_call.1} parent=1 // pred_fallthru
      _
    %v21 = vld [vmem:[#allocation2] sm:$0xff]
    %v22 = vld [vmem:[#allocation2 + $0x8] sm:$0xff]
    %v23 = vmax.f32 %v21, %v22
    %v24 = vld [vmem:[#allocation2 + $0x10] sm:$0xff]
    %v25 = vmax.f32 %v23, %v24
    %v26 = vld [vmem:[#allocation2 + $0x18] sm:$0xff]
    %v27 = vmax.f32 %v25, %v26
    %v28 = vmax.f32 %v27, 0.0
    %29 = vst [vmem:[#allocation5] sm:$0xff] %v28
    // Predicated region
    $region10: #{tpu_custom_call.1} parent=1 // pred_check
      _
    $region11: #{tpu_custom_call.1} parent=1 // pred_check_branch
      %31 = sbr.rel (0) target = $region13
    $region12: #{tpu_custom_call.1} parent=1 // pred_region
      %s33 = ssub.s32 128, 128
      %34 = vsyncadd [#allocation4], %s33
      %s36 = sshll.u32 [#allocation5], 4
      %s37 = int_to_ptr.vmem [resolvable:$true] %s36
      %39 = dma.vmem_to_hbm [thread:$0]  %s37, 128, %s1, [#allocation4]
    $region13: #{tpu_custom_call.1} parent=1 // pred_fallthru
      _
    // Predicated region
    $region14: #{tpu_custom_call.1} parent=1 // pred_check
      _
    $region15: #{tpu_custom_call.1} parent=1 // pred_check_branch
      %41 = sbr.rel (0) target = $region17
    $region16: #{tpu_custom_call.1} parent=1 // pred_region
      %42 = dma.done [#allocation4], 128
    $region17: #{tpu_custom_call.1} parent=1 // pred_fallthru
      _
    %43 = vsyncpa [#allocation3], 1
    %44 = vsyncpa [#allocation4], 1

</llo_original>
